<compile_context>
chip_gen: v5e
topology: v5e:2x2
jax: 0.10.0
libtpu: 0.0.40
codegen_flags: <defaults>
</compile_context>

<pallas_src>
import numpy as np
import jax
import jax.numpy as jnp
from jax.experimental import pallas as pl
from jax.experimental.pallas import tpu as pltpu


def _round_up(x, m):
    return ((x + m - 1) // m) * m


def _disc_kernel(hu_ref, w_ref, hs_ref, b_ref, out_ref):
    # hu_ref : (tile_N, n_h)        compute dtype (bf16 or f32)   -- streamed
    # w_ref  : (n_h, n_h)           compute dtype                 -- grid-resident
    # hs_ref : (R+1, tile_N, n_h)   compute dtype                 -- streamed
    # b_ref  : (1,) f32 in SMEM
    # out_ref: (R+1, tile_N) f32    lane-dense output tile
    u = jnp.dot(hu_ref[...], w_ref[...], preferred_element_type=jnp.float32)  # (tile_N, n_h)
    b = b_ref[0]                           # read the SMEM scalar once (hoisted)
    r1 = hs_ref.shape[0]
    for r in range(r1):                    # static unroll; R+1 is small (2..4)
        h_r = hs_ref[r].astype(jnp.float32)             # f32 elementwise path (v5e-safe)
        out_ref[r, :] = jnp.sum(u * h_r, axis=-1) + b   # VPU mul + XLU lane reduce


def patch_discriminator_forward(h_ano, h_unano, weight, bias, negsamp_round,
                                *, compute_dtype=jnp.bfloat16, tile_n=None):
    """Pallas forward for Patch_Discriminator.

    h_ano, h_unano: (N, n_h) float32
    weight:         (1, n_h, n_h) float32 (nn.Bilinear weight)
    bias:           (1,) float32
    returns logits: ((negsamp_round+1)*N, 1) float32
    """
    N, n_h = h_ano.shape
    r1 = negsamp_round + 1

    # --- negative-sample row shuffle: fuse the R concats into ONE gather -------------
    idx = np.empty((r1, N), dtype=np.int32)
    idx[0] = np.arange(N, dtype=np.int32)
    cur = idx[0]
    for r in range(1, r1):
        cur = np.concatenate([cur[-2:-1], cur[:-1]])    # exact torch.cat semantics
        idx[r] = cur
    h_stack = jnp.take(h_ano, jnp.asarray(idx), axis=0)  # (R+1, N, n_h), written once

    # --- tiling: lane-dense, 128-multiple tiles over N --------------------------------
    if tile_n is None:
        tile_n = min(512, _round_up(N, 128))   # 512-row cap keeps v7x (64 MiB VMEM) safe
    tile_n = max(128, _round_up(tile_n, 128))
    n_pad = _round_up(N, tile_n)
    num_tiles = n_pad // tile_n

    pad = n_pad - N
    hu = h_unano
    hs = h_stack
    if pad:
        hu = jnp.pad(hu, ((0, pad), (0, 0)))
        hs = jnp.pad(hs, ((0, 0), (0, pad), (0, 0)))

    hu = hu.astype(compute_dtype)
    hs = hs.astype(compute_dtype)
    w0 = weight[0].astype(compute_dtype)
    b = bias.astype(jnp.float32).reshape((1,))

    # Explicit VMEM budget: streamed inputs are double-buffered; W is resident.
    itemsize = np.dtype(compute_dtype).itemsize
    est = (2 * (tile_n * n_h + r1 * tile_n * n_h) * itemsize   # hu + h_stack, x2 buffers
           + n_h * n_h * itemsize                              # resident W
           + 2 * r1 * tile_n * 4)                              # output tile, x2 buffers
    vmem_limit = int(min(48 * 1024 * 1024, max(32 * 1024 * 1024, 2 * est)))

    scores = pl.pallas_call(
        _disc_kernel,
        out_shape=jax.ShapeDtypeStruct((r1, n_pad), jnp.float32),
        grid=(num_tiles,),
        in_specs=[
            pl.BlockSpec((tile_n, n_h), lambda i: (i, 0)),          # h_unano (streamed)
            pl.BlockSpec((n_h, n_h), lambda i: (0, 0)),             # W0 (resident)
            pl.BlockSpec((r1, tile_n, n_h), lambda i: (0, i, 0)),   # h_stack (streamed)
            pl.BlockSpec(memory_space=pltpu.MemorySpace.SMEM),      # bias scalar
        ],
        out_specs=pl.BlockSpec((r1, tile_n), lambda i: (0, i)),
        compiler_params=pltpu.CompilerParams(
            dimension_semantics=("parallel",),
            vmem_limit_bytes=vmem_limit),
    )(hu, w0, hs, b)

    # torch.cat(scs) row order == row-major flatten of (R+1, N); keep trailing (, 1).
    return scores[:, :N].reshape(r1 * N, 1)


def _reference_forward(h_ano, h_unano, weight, bias, negsamp_round):
    """Plain-JAX reference mirroring the PyTorch forward (f32)."""
    def f_k(x1, x2):
        s = jnp.einsum('ni,ij,nj->n', x1, weight[0], x2) + bias[0]
        return s[:, None]

    scs = [f_k(h_unano, h_ano)]
    h_mi = h_ano
    for _ in range(negsamp_round):
        h_mi = jnp.concatenate([h_mi[-2:-1, :], h_mi[:-1, :]], axis=0)
        scs.append(f_k(h_unano, h_mi))
    return jnp.concatenate(scs, axis=0)


if __name__ == "__main__":
    # Small, module-consistent shapes: N nodes x n_h hidden.
    N, n_h, negsamp_round = 8, 32, 2

    key = jax.random.PRNGKey(0)
    k_ano, k_unano, k_w = jax.random.split(key, 3)
    h_ano = jax.random.normal(k_ano, (N, n_h), dtype=jnp.float32)
    h_unano = jax.random.normal(k_unano, (N, n_h), dtype=jnp.float32)

    # Deterministic params matching __init__: xavier_uniform_ on (1, n_h, n_h), bias=0.
    bound = float(np.sqrt(6.0 / (n_h + n_h)))
    weight = jax.random.uniform(k_w, (1, n_h, n_h), minval=-bound, maxval=bound,
                                dtype=jnp.float32)
    bias = jnp.zeros((1,), dtype=jnp.float32)

    ref = _reference_forward(h_ano, h_unano, weight, bias, negsamp_round)

    # 1) exact-semantics check: f32 compute path.
    out_f32 = patch_discriminator_forward(h_ano, h_unano, weight, bias, negsamp_round,
                                          compute_dtype=jnp.float32)
    out_f32 = jax.block_until_ready(out_f32)
    assert out_f32.shape == ((negsamp_round + 1) * N, 1), out_f32.shape
    np.testing.assert_allclose(np.asarray(out_f32), np.asarray(ref), rtol=1e-5, atol=1e-5)

    # 2) default fast path: bf16 inputs, f32 accumulation (looser tolerance).
    out_bf16 = patch_discriminator_forward(h_ano, h_unano, weight, bias, negsamp_round)
    out_bf16 = jax.block_until_ready(out_bf16)
    assert out_bf16.shape == ((negsamp_round + 1) * N, 1), out_bf16.shape
    np.testing.assert_allclose(np.asarray(out_bf16), np.asarray(ref), rtol=5e-2, atol=2e-1)

    # 3) multi-tile grid check (2 tiles of 128 rows, negsamp_round=3).
    N2, negsamp2 = 200, 3
    k1, k2 = jax.random.split(jax.random.PRNGKey(1))
    h_ano2 = jax.random.normal(k1, (N2, n_h), dtype=jnp.float32)
    h_unano2 = jax.random.normal(k2, (N2, n_h), dtype=jnp.float32)
    ref2 = _reference_forward(h_ano2, h_unano2, weight, bias, negsamp2)
    out2 = patch_discriminator_forward(h_ano2, h_unano2, weight, bias, negsamp2,
                                       compute_dtype=jnp.float32, tile_n=128)
    out2 = jax.block_until_ready(out2)
    np.testing.assert_allclose(np.asarray(out2), np.asarray(ref2), rtol=1e-5, atol=1e-5)

    print("KERNEL_OK")
</pallas_src>

<mosaic_0001>
module attributes {stable_mosaic.version = 11 : i64} {
  func.func @_disc_kernel(%arg0: i32, %arg1: memref<128x32xf32, #tpu.memory_space<vmem>>, %arg2: memref<32x32xf32, #tpu.memory_space<vmem>>, %arg3: memref<3x128x32xf32, #tpu.memory_space<vmem>>, %arg4: memref<1xf32, #tpu.memory_space<smem>>, %arg5: memref<3x128xf32, #tpu.memory_space<vmem>>) attributes {dimension_semantics = [#tpu.dimension_semantics<parallel>], iteration_bounds = array<i64: 1>, scalar_prefetch = 0 : i64, scratch_operands = 0 : i64, tpu.core_type = #tpu.core_type<tc>, window_params = [{transform_indices = @transform_0, window_bounds = array<i64: 128, 32>}, {pipeline_mode = #tpu.pipeline_mode<synchronous>, transform_indices = @transform_1, window_bounds = array<i64: 32, 32>}, {transform_indices = @transform_2, window_bounds = array<i64: 3, 128, 32>}, {transform_indices = @transform_3, window_bounds = array<i64: 1>}, {transform_indices = @transform_4, window_bounds = array<i64: 3, 128>}]} {
    %c0 = arith.constant 0 : index
    %c0_0 = arith.constant 0 : index
    %0 = vector.load %arg1[%c0, %c0_0] : memref<128x32xf32, #tpu.memory_space<vmem>>, vector<128x32xf32>
    %c0_1 = arith.constant 0 : index
    %c0_2 = arith.constant 0 : index
    %1 = vector.load %arg2[%c0_1, %c0_2] : memref<32x32xf32, #tpu.memory_space<vmem>>, vector<32x32xf32>
    %cst = arith.constant dense<0.000000e+00> : vector<128x32xf32>
    %2 = tpu.matmul %0, %1, %cst {dimension_numbers = #tpu.dot_dimension_numbers<[1], [0], [0], [1], [0, 0, 1, 1], [], []>} : vector<128x32xf32>, vector<32x32xf32>, vector<128x32xf32> -> vector<128x32xf32>
    %c0_3 = arith.constant 0 : index
    %3 = memref.load %arg4[%c0_3] : memref<1xf32, #tpu.memory_space<smem>>
    %c0_4 = arith.constant 0 : index
    %c0_5 = arith.constant 0 : index
    %c0_6 = arith.constant 0 : index
    %4 = vector.load %arg3[%c0_4, %c0_5, %c0_6] : memref<3x128x32xf32, #tpu.memory_space<vmem>>, vector<1x128x32xf32>
    %5 = vector.shape_cast %4 : vector<1x128x32xf32> to vector<128x32xf32>
    %6 = arith.mulf %2, %5 : vector<128x32xf32>
    %cst_7 = arith.constant dense<0.000000e+00> : vector<128xf32>
    %7 = vector.multi_reduction <add>, %6, %cst_7 [1] : vector<128x32xf32> to vector<128xf32>
    %8 = vector.broadcast %3 : f32 to vector<128xf32>
    %9 = arith.addf %7, %8 : vector<128xf32>
    %c0_8 = arith.constant 0 : index
    %c0_9 = arith.constant 0 : index
    %10 = vector.load %arg5[%c0_8, %c0_9] : memref<3x128xf32, #tpu.memory_space<vmem>>, vector<1x128xf32>
    %11 = vector.shape_cast %10 : vector<1x128xf32> to vector<128xf32>
    %12 = vector.shape_cast %9 : vector<128xf32> to vector<1x128xf32>
    tpu.vector_store %arg5[%c0_8, %c0_9], %12 {strides = array<i32>} : memref<3x128xf32, #tpu.memory_space<vmem>>, vector<1x128xf32>,
    %c1 = arith.constant 1 : index
    %c0_10 = arith.constant 0 : index
    %c0_11 = arith.constant 0 : index
    %13 = vector.load %arg3[%c1, %c0_10, %c0_11] : memref<3x128x32xf32, #tpu.memory_space<vmem>>, vector<1x128x32xf32>
    %14 = vector.shape_cast %13 : vector<1x128x32xf32> to vector<128x32xf32>
    %15 = arith.mulf %2, %14 : vector<128x32xf32>
    %cst_12 = arith.constant dense<0.000000e+00> : vector<128xf32>
    %16 = vector.multi_reduction <add>, %15, %cst_12 [1] : vector<128x32xf32> to vector<128xf32>
    %17 = vector.broadcast %3 : f32 to vector<128xf32>
    %18 = arith.addf %16, %17 : vector<128xf32>
    %c1_13 = arith.constant 1 : index
    %c0_14 = arith.constant 0 : index
    %19 = vector.load %arg5[%c1_13, %c0_14] : memref<3x128xf32, #tpu.memory_space<vmem>>, vector<1x128xf32>
    %20 = vector.shape_cast %19 : vector<1x128xf32> to vector<128xf32>
    %21 = vector.shape_cast %18 : vector<128xf32> to vector<1x128xf32>
    tpu.vector_store %arg5[%c1_13, %c0_14], %21 {strides = array<i32>} : memref<3x128xf32, #tpu.memory_space<vmem>>, vector<1x128xf32>,
    %c2 = arith.constant 2 : index
    %c0_15 = arith.constant 0 : index
    %c0_16 = arith.constant 0 : index
    %22 = vector.load %arg3[%c2, %c0_15, %c0_16] : memref<3x128x32xf32, #tpu.memory_space<vmem>>, vector<1x128x32xf32>
    %23 = vector.shape_cast %22 : vector<1x128x32xf32> to vector<128x32xf32>
    %24 = arith.mulf %2, %23 : vector<128x32xf32>
    %cst_17 = arith.constant dense<0.000000e+00> : vector<128xf32>
    %25 = vector.multi_reduction <add>, %24, %cst_17 [1] : vector<128x32xf32> to vector<128xf32>
    %26 = vector.broadcast %3 : f32 to vector<128xf32>
    %27 = arith.addf %25, %26 : vector<128xf32>
    %c2_18 = arith.constant 2 : index
    %c0_19 = arith.constant 0 : index
    %28 = vector.load %arg5[%c2_18, %c0_19] : memref<3x128xf32, #tpu.memory_space<vmem>>, vector<1x128xf32>
    %29 = vector.shape_cast %28 : vector<1x128xf32> to vector<128xf32>
    %30 = vector.shape_cast %27 : vector<128xf32> to vector<1x128xf32>
    tpu.vector_store %arg5[%c2_18, %c0_19], %30 {strides = array<i32>} : memref<3x128xf32, #tpu.memory_space<vmem>>, vector<1x128xf32>,
    return
  }
  func.func @transform_0(%arg0: i32) -> (i32, i32) {
    %c0_i32 = arith.constant 0 : i32
    %c0_i32_0 = arith.constant 0 : i32
    return %arg0, %c0_i32 : i32, i32
  }
  func.func @transform_1(%arg0: i32) -> (i32, i32) {
    %c0_i32 = arith.constant 0 : i32
    %c0_i32_0 = arith.constant 0 : i32
    %c0_i32_1 = arith.constant 0 : i32
    return %c0_i32, %c0_i32_0 : i32, i32
  }
  func.func @transform_2(%arg0: i32) -> (i32, i32, i32) {
    %c0_i32 = arith.constant 0 : i32
    %c0_i32_0 = arith.constant 0 : i32
    %c0_i32_1 = arith.constant 0 : i32
    return %c0_i32, %arg0, %c0_i32_0 : i32, i32, i32
  }
  func.func @transform_3(%arg0: i32) -> i32 {
    %c0_i32 = arith.constant 0 : i32
    %c0_i32_0 = arith.constant 0 : i32
    return %c0_i32 : i32
  }
  func.func @transform_4(%arg0: i32) -> (i32, i32) {
    %c0_i32 = arith.constant 0 : i32
    %c0_i32_0 = arith.constant 0 : i32
    return %c0_i32, %arg0 : i32, i32
  }
}

</mosaic_0001>

<llo_original>
// kernel: tpu_custom_call.1
$region0: #{tpu_custom_call.1}
  #allocation0 [shape = 'u32[]', space=smem, size = 0x4, offset = 0x4, fixed_abs, tag = 'smem constant byte address 0x4 - core index']
  #allocation1 [shape = 'u32[72,128]{1,0:T(1,128)}', space=vmem, size = 0x9000, scoped, tag = 'internal scratch']
  #allocation2 [shape = 'f32[1]{0:T(128)S(6)}', space=smem, size = 0x200, scoped, tag = 'scoped memory for tpu_custom_call.1']
  %s0 = inlined_call_operand.vmem [shape: f32[128,32], index: 0, kind: input, shape index: {}]
  %s1 = inlined_call_operand.vmem [shape: f32[32,32], index: 1, kind: input, shape index: {}]
  %s2 = inlined_call_operand.vmem [shape: f32[3,128,32], index: 2, kind: input, shape index: {}]
  %s3 = inlined_call_operand.<no memory space> [shape: f32[1], index: 3, kind: input, shape index: {}]
  %s4 = inlined_call_operand.hbm [shape: f32[3,128], index: 4, kind: output, shape index: {}]
  %s5 = sld [smem:[#allocation0]]
  $region26: #{tpu_custom_call.1} parent=0
    _
  %s7 = ssub.s32 1, %s5
  %s8 = scalar_select 0, %s7, %s5
  %9 = sst [smem:[#allocation2]] %s3
  $region1: #{tpu_custom_call.1} parent=0
    #allocation3 [shape = 'u8[2048]{0}', space=vmem, size = 0x800, scoped, tag = 'output window, operand 0, single buffered']
    #allocation4 [shape = 's32[1]{0}', space=sflag, size = 0x4, scoped, tag = 'scoped memory for tpu_custom_call.1']
    %10 = vsyncpa [#allocation4], 0
    // Predicated region
    $region2: #{tpu_custom_call.1} parent=1 // pred_check
      _
    $region3: #{tpu_custom_call.1} parent=1 // pred_check_branch
      %12 = sbr.rel (0) target = $region5
    $region4: #{tpu_custom_call.1} parent=1 // pred_region
      _
    $region5: #{tpu_custom_call.1} parent=1 // pred_fallthru
      _
    // Predicated region
    $region6: #{tpu_custom_call.1} parent=1 // pred_check
      _
    $region7: #{tpu_custom_call.1} parent=1 // pred_check_branch
      %14 = sbr.rel (0) target = $region9
    $region8: #{tpu_custom_call.1} parent=1 // pred_region
      _
    $region9: #{tpu_custom_call.1} parent=1 // pred_fallthru
      _
    // Predicated region
    $region10: #{tpu_custom_call.1} parent=1 // pred_check
      _
    $region11: #{tpu_custom_call.1} parent=1 // pred_check_branch
      %16 = sbr.rel (0) target = $region13
    $region12: #{tpu_custom_call.1} parent=1 // pred_region
      _
    $region13: #{tpu_custom_call.1} parent=1 // pred_fallthru
      _
    // Predicated region
    $region14: #{tpu_custom_call.1} parent=1 // pred_check
      _
    $region15: #{tpu_custom_call.1} parent=1 // pred_check_branch
      %18 = sbr.rel (0) target = $region17
    $region16: #{tpu_custom_call.1} parent=1 // pred_region
      _
    $region17: #{tpu_custom_call.1} parent=1 // pred_fallthru
      _
    %v19 = vld [vmem:[%s0] sm:$0xff]
    %v20 = vld [vmem:[%s0 + $0x8] sm:$0xff]
    %v21 = vld [vmem:[%s0 + $0x10] sm:$0xff]
    %v22 = vld [vmem:[%s0 + $0x18] sm:$0xff]
    %v23 = vld [vmem:[%s0 + $0x20] sm:$0xff]
    %v24 = vld [vmem:[%s0 + $0x28] sm:$0xff]
    %v25 = vld [vmem:[%s0 + $0x30] sm:$0xff]
    %v26 = vld [vmem:[%s0 + $0x38] sm:$0xff]
    %v27 = vld [vmem:[%s0 + $0x40] sm:$0xff]
    %v28 = vld [vmem:[%s0 + $0x48] sm:$0xff]
    %v29 = vld [vmem:[%s0 + $0x50] sm:$0xff]
    %v30 = vld [vmem:[%s0 + $0x58] sm:$0xff]
    %v31 = vld [vmem:[%s0 + $0x60] sm:$0xff]
    %v32 = vld [vmem:[%s0 + $0x68] sm:$0xff]
    %v33 = vld [vmem:[%s0 + $0x70] sm:$0xff]
    %v34 = vld [vmem:[%s0 + $0x78] sm:$0xff]
    %v35 = vld [vmem:[%s1] sm:$0xff]
    %v36 = vld [vmem:[%s1 + $0x8] sm:$0xff]
    %v37 = vld [vmem:[%s1 + $0x10] sm:$0xff]
    %v38 = vld [vmem:[%s1 + $0x18] sm:$0xff]
    %vm39 = vcmask 261120
    %v41 = vsel %vm39, %v19, 0
    %v44 = vsel %vm39, %v20, 0
    %v47 = vsel %vm39, %v21, 0
    %v50 = vsel %vm39, %v22, 0
    %v53 = vsel %vm39, %v23, 0
    %v56 = vsel %vm39, %v24, 0
    %v59 = vsel %vm39, %v25, 0
    %v62 = vsel %vm39, %v26, 0
    %v65 = vsel %vm39, %v27, 0
    %v68 = vsel %vm39, %v28, 0
    %v71 = vsel %vm39, %v29, 0
    %v74 = vsel %vm39, %v30, 0
    %v77 = vsel %vm39, %v31, 0
    %v80 = vsel %vm39, %v32, 0
    %v83 = vsel %vm39, %v33, 0
    %v86 = vsel %vm39, %v34, 0
    %88 = vmatpush.msra.mxu0 0.0
    %89 = vmatpush.msra.mxu0 0.0
    %90 = vmatpush.msra.mxu0 0.0
    %91 = vmatpush.msra.mxu0 0.0
    %92 = vmatpush.msra.mxu0 0.0
    %93 = vmatpush.msra.mxu0 0.0
    %94 = vmatpush.msra.mxu0 0.0
    %95 = vmatpush.msra.mxu0 0.0
    %96 = vmatpush.msra.mxu0 0.0
    %97 = vmatpush.msra.mxu0 0.0
    %98 = vmatpush.msra.mxu0 0.0
    %99 = vmatpush.msra.mxu0 0.0
    %100 = vmatpush.msra.mxu0 %v38
    %101 = vmatpush.msra.mxu0 %v37
    %102 = vmatpush.msra.mxu0 %v36
    %103 = vmatpush.msra.mxu0 %v35
    %104 = vmatmul.f32.gmra.mxu0 %v41
    %v105 = vpop.f32.mrf.mxu0
    %v106 = vadd.f32 0.0, %v105
    %107 = vmatmul.f32.gmra.mxu0 %v44
    %v108 = vpop.f32.mrf.mxu0
    %v109 = vadd.f32 0.0, %v108
    %110 = vmatmul.f32.gmra.mxu0 %v47
    %v111 = vpop.f32.mrf.mxu0
    %v112 = vadd.f32 0.0, %v111
    %113 = vmatmul.f32.gmra.mxu0 %v50
    %v114 = vpop.f32.mrf.mxu0
    %v115 = vadd.f32 0.0, %v114
    %116 = vmatmul.f32.gmra.mxu0 %v53
    %v117 = vpop.f32.mrf.mxu0
    %v118 = vadd.f32 0.0, %v117
    %119 = vmatmul.f32.gmra.mxu0 %v56
    %v120 = vpop.f32.mrf.mxu0
    %v121 = vadd.f32 0.0, %v120
    %122 = vmatmul.f32.gmra.mxu0 %v59
    %v123 = vpop.f32.mrf.mxu0
    %v124 = vadd.f32 0.0, %v123
    %125 = vmatmul.f32.gmra.mxu0 %v62
    %v126 = vpop.f32.mrf.mxu0
    %v127 = vadd.f32 0.0, %v126
    %128 = vmatmul.f32.gmra.mxu0 %v65
    %v129 = vpop.f32.mrf.mxu0
    %v130 = vadd.f32 0.0, %v129
    %131 = vmatmul.f32.gmra.mxu0 %v68
    %v132 = vpop.f32.mrf.mxu0
    %v133 = vadd.f32 0.0, %v132
    %134 = vmatmul.f32.gmra.mxu0 %v71
    %v135 = vpop.f32.mrf.mxu0
    %v136 = vadd.f32 0.0, %v135
    %137 = vmatmul.f32.gmra.mxu0 %v74
    %v138 = vpop.f32.mrf.mxu0
    %v139 = vadd.f32 0.0, %v138
    %140 = vmatmul.f32.gmra.mxu0 %v77
    %v141 = vpop.f32.mrf.mxu0
    %v142 = vadd.f32 0.0, %v141
    %143 = vmatmul.f32.gmra.mxu0 %v80
    %v144 = vpop.f32.mrf.mxu0
    %v145 = vadd.f32 0.0, %v144
    %146 = vmatmul.f32.gmra.mxu0 %v83
    %v147 = vpop.f32.mrf.mxu0
    %v148 = vadd.f32 0.0, %v147
    %149 = vmatmul.f32.gmra.mxu0 %v86
    %v150 = vpop.f32.mrf.mxu0
    %v151 = vadd.f32 0.0, %v150
    %152 = vdwg.mxu0
    %s153 = sld [smem:[#allocation2]]
    %v154 = vld [vmem:[%s2] sm:$0xff]
    %v155 = vld [vmem:[%s2 + $0x8] sm:$0xff]
    %v156 = vld [vmem:[%s2 + $0x10] sm:$0xff]
    %v157 = vld [vmem:[%s2 + $0x18] sm:$0xff]
    %v158 = vld [vmem:[%s2 + $0x20] sm:$0xff]
    %v159 = vld [vmem:[%s2 + $0x28] sm:$0xff]
    %v160 = vld [vmem:[%s2 + $0x30] sm:$0xff]
    %v161 = vld [vmem:[%s2 + $0x38] sm:$0xff]
    %v162 = vld [vmem:[%s2 + $0x40] sm:$0xff]
    %v163 = vld [vmem:[%s2 + $0x48] sm:$0xff]
    %v164 = vld [vmem:[%s2 + $0x50] sm:$0xff]
    %v165 = vld [vmem:[%s2 + $0x58] sm:$0xff]
    %v166 = vld [vmem:[%s2 + $0x60] sm:$0xff]
    %v167 = vld [vmem:[%s2 + $0x68] sm:$0xff]
    %v168 = vld [vmem:[%s2 + $0x70] sm:$0xff]
    %v169 = vld [vmem:[%s2 + $0x78] sm:$0xff]
    %v170 = vmul.f32 %v106, %v154
    %v171 = vmul.f32 %v109, %v155
    %v172 = vmul.f32 %v112, %v156
    %v173 = vmul.f32 %v115, %v157
    %v174 = vmul.f32 %v118, %v158
    %v175 = vmul.f32 %v121, %v159
    %v176 = vmul.f32 %v124, %v160
    %v177 = vmul.f32 %v127, %v161
    %v178 = vmul.f32 %v130, %v162
    %v179 = vmul.f32 %v133, %v163
    %v180 = vmul.f32 %v136, %v164
    %v181 = vmul.f32 %v139, %v165
    %v182 = vmul.f32 %v142, %v166
    %v183 = vmul.f32 %v145, %v167
    %v184 = vmul.f32 %v148, %v168
    %v185 = vmul.f32 %v151, %v169
    %v186 = vsel %vm39, %v170, 0.0
    %187 = vadd.xlane.f32.xlu0 %v186
    %v188 = vpop.xlane.xlu0 %187
    %v189 = vsel %vm39, %v171, 0.0
    %190 = vadd.xlane.f32.xlu0 %v189
    %v191 = vpop.xlane.xlu0 %190
    %v192 = vsel %vm39, %v172, 0.0
    %193 = vadd.xlane.f32.xlu0 %v192
    %v194 = vpop.xlane.xlu0 %193
    %v195 = vsel %vm39, %v173, 0.0
    %196 = vadd.xlane.f32.xlu0 %v195
    %v197 = vpop.xlane.xlu0 %196
    %v198 = vsel %vm39, %v174, 0.0
    %199 = vadd.xlane.f32.xlu0 %v198
    %v200 = vpop.xlane.xlu0 %199
    %v201 = vsel %vm39, %v175, 0.0
    %202 = vadd.xlane.f32.xlu0 %v201
    %v203 = vpop.xlane.xlu0 %202
    %v204 = vsel %vm39, %v176, 0.0
    %205 = vadd.xlane.f32.xlu0 %v204
    %v206 = vpop.xlane.xlu0 %205
    %v207 = vsel %vm39, %v177, 0.0
    %208 = vadd.xlane.f32.xlu0 %v207
    %v209 = vpop.xlane.xlu0 %208
    %v210 = vsel %vm39, %v178, 0.0
    %211 = vadd.xlane.f32.xlu0 %v210
    %v212 = vpop.xlane.xlu0 %211
    %v213 = vsel %vm39, %v179, 0.0
    %214 = vadd.xlane.f32.xlu0 %v213
    %v215 = vpop.xlane.xlu0 %214
    %v216 = vsel %vm39, %v180, 0.0
    %217 = vadd.xlane.f32.xlu0 %v216
    %v218 = vpop.xlane.xlu0 %217
    %v219 = vsel %vm39, %v181, 0.0
    %220 = vadd.xlane.f32.xlu0 %v219
    %v221 = vpop.xlane.xlu0 %220
    %v222 = vsel %vm39, %v182, 0.0
    %223 = vadd.xlane.f32.xlu0 %v222
    %v224 = vpop.xlane.xlu0 %223
    %v225 = vsel %vm39, %v183, 0.0
    %226 = vadd.xlane.f32.xlu0 %v225
    %v227 = vpop.xlane.xlu0 %226
    %v228 = vsel %vm39, %v184, 0.0
    %229 = vadd.xlane.f32.xlu0 %v228
    %v230 = vpop.xlane.xlu0 %229
    %v231 = vsel %vm39, %v185, 0.0
    %232 = vadd.xlane.f32.xlu0 %v231
    %v233 = vpop.xlane.xlu0 %232
    %v234 = vstv %s153
    %v235 = vadd.f32 %v188, %v234
    %v236 = vadd.f32 %v191, %v234
    %v237 = vadd.f32 %v194, %v234
    %v238 = vadd.f32 %v197, %v234
    %v239 = vadd.f32 %v200, %v234
    %v240 = vadd.f32 %v203, %v234
    %v241 = vadd.f32 %v206, %v234
    %v242 = vadd.f32 %v209, %v234
    %v243 = vadd.f32 %v212, %v234
    %v244 = vadd.f32 %v215, %v234
    %v245 = vadd.f32 %v218, %v234
    %v246 = vadd.f32 %v221, %v234
    %v247 = vadd.f32 %v224, %v234
    %v248 = vadd.f32 %v227, %v234
    %v249 = vadd.f32 %v230, %v234
    %v250 = vadd.f32 %v233, %v234
    %v267 = vlaneseq
    %v268 = vand.u32 %v267, 127
    %v269 = vperm.slane %v235, %v268
    %v270 = vadd.s32 %v268, 4294967288
    %v271 = vperm.slane %v236, %v270
    %vm272 = vcmask 130112
    %v273 = vsel %vm272, %v271, %v269
    %v274 = vadd.s32 %v268, 4294967280
    %v275 = vperm.slane %v237, %v274
    %vm276 = vcmask 195712
    %v277 = vsel %vm276, %v275, %v273
    %v278 = vadd.s32 %v268, 4294967272
    %v279 = vperm.slane %v238, %v278
    %vm280 = vcmask 261312
    %v281 = vsel %vm280, %v279, %v277
    %v282 = vadd.s32 %v268, 4294967264
    %v283 = vperm.slane %v239, %v282
    %vm284 = vcmask 326912
    %v285 = vsel %vm284, %v283, %v281
    %v286 = vadd.s32 %v268, 4294967256
    %v287 = vperm.slane %v240, %v286
    %vm288 = vcmask 392512
    %v289 = vsel %vm288, %v287, %v285
    %v290 = vadd.s32 %v268, 4294967248
    %v291 = vperm.slane %v241, %v290
    %vm292 = vcmask 458112
    %v293 = vsel %vm292, %v291, %v289
    %v294 = vadd.s32 %v268, 4294967240
    %v295 = vperm.slane %v242, %v294
    %vm296 = vcmask 523712
    %v297 = vsel %vm296, %v295, %v293
    %v298 = vadd.s32 %v268, 4294967232
    %v299 = vperm.slane %v243, %v298
    %vm300 = vcmask 589312
    %v301 = vsel %vm300, %v299, %v297
    %v302 = vadd.s32 %v268, 4294967224
    %v303 = vperm.slane %v244, %v302
    %vm304 = vcmask 654912
    %v305 = vsel %vm304, %v303, %v301
    %v306 = vadd.s32 %v268, 4294967216
    %v307 = vperm.slane %v245, %v306
    %vm308 = vcmask 720512
    %v309 = vsel %vm308, %v307, %v305
    %v310 = vadd.s32 %v268, 4294967208
    %v311 = vperm.slane %v246, %v310
    %vm312 = vcmask 786112
    %v313 = vsel %vm312, %v311, %v309
    %v314 = vadd.s32 %v268, 4294967200
    %v315 = vperm.slane %v247, %v314
    %vm316 = vcmask 851712
    %v317 = vsel %vm316, %v315, %v313
    %v318 = vadd.s32 %v268, 4294967192
    %v319 = vperm.slane %v248, %v318
    %vm320 = vcmask 917312
    %v321 = vsel %vm320, %v319, %v317
    %v322 = vadd.s32 %v268, 4294967184
    %v323 = vperm.slane %v249, %v322
    %vm324 = vcmask 982912
    %v325 = vsel %vm324, %v323, %v321
    %v326 = vadd.s32 %v268, 4294967176
    %v327 = vperm.slane %v250, %v326
    %vm328 = vcmask 1048512
    %v329 = vsel %vm328, %v327, %v325
    %331 = vst [vmem:[#allocation3] sm:$0x1] %v329
    %s332 = scalar_lea.vmem %s2, 128
    %v333 = vld [vmem:[%s332] sm:$0xff]
    %v334 = vld [vmem:[%s332 + $0x8] sm:$0xff]
    %v335 = vld [vmem:[%s332 + $0x10] sm:$0xff]
    %v336 = vld [vmem:[%s332 + $0x18] sm:$0xff]
    %v337 = vld [vmem:[%s332 + $0x20] sm:$0xff]
    %v338 = vld [vmem:[%s332 + $0x28] sm:$0xff]
    %v339 = vld [vmem:[%s332 + $0x30] sm:$0xff]
    %v340 = vld [vmem:[%s332 + $0x38] sm:$0xff]
    %v341 = vld [vmem:[%s332 + $0x40] sm:$0xff]
    %v342 = vld [vmem:[%s332 + $0x48] sm:$0xff]
    %v343 = vld [vmem:[%s332 + $0x50] sm:$0xff]
    %v344 = vld [vmem:[%s332 + $0x58] sm:$0xff]
    %v345 = vld [vmem:[%s332 + $0x60] sm:$0xff]
    %v346 = vld [vmem:[%s332 + $0x68] sm:$0xff]
    %v347 = vld [vmem:[%s332 + $0x70] sm:$0xff]
    %v348 = vld [vmem:[%s332 + $0x78] sm:$0xff]
    %v349 = vmul.f32 %v106, %v333
    %v350 = vmul.f32 %v109, %v334
    %v351 = vmul.f32 %v112, %v335
    %v352 = vmul.f32 %v115, %v336
    %v353 = vmul.f32 %v118, %v337
    %v354 = vmul.f32 %v121, %v338
    %v355 = vmul.f32 %v124, %v339
    %v356 = vmul.f32 %v127, %v340
    %v357 = vmul.f32 %v130, %v341
    %v358 = vmul.f32 %v133, %v342
    %v359 = vmul.f32 %v136, %v343
    %v360 = vmul.f32 %v139, %v344
    %v361 = vmul.f32 %v142, %v345
    %v362 = vmul.f32 %v145, %v346
    %v363 = vmul.f32 %v148, %v347
    %v364 = vmul.f32 %v151, %v348
    %v365 = vsel %vm39, %v349, 0.0
    %366 = vadd.xlane.f32.xlu0 %v365
    %v367 = vpop.xlane.xlu0 %366
    %v368 = vsel %vm39, %v350, 0.0
    %369 = vadd.xlane.f32.xlu0 %v368
    %v370 = vpop.xlane.xlu0 %369
    %v371 = vsel %vm39, %v351, 0.0
    %372 = vadd.xlane.f32.xlu0 %v371
    %v373 = vpop.xlane.xlu0 %372
    %v374 = vsel %vm39, %v352, 0.0
    %375 = vadd.xlane.f32.xlu0 %v374
    %v376 = vpop.xlane.xlu0 %375
    %v377 = vsel %vm39, %v353, 0.0
    %378 = vadd.xlane.f32.xlu0 %v377
    %v379 = vpop.xlane.xlu0 %378
    %v380 = vsel %vm39, %v354, 0.0
    %381 = vadd.xlane.f32.xlu0 %v380
    %v382 = vpop.xlane.xlu0 %381
    %v383 = vsel %vm39, %v355, 0.0
    %384 = vadd.xlane.f32.xlu0 %v383
    %v385 = vpop.xlane.xlu0 %384
    %v386 = vsel %vm39, %v356, 0.0
    %387 = vadd.xlane.f32.xlu0 %v386
    %v388 = vpop.xlane.xlu0 %387
    %v389 = vsel %vm39, %v357, 0.0
    %390 = vadd.xlane.f32.xlu0 %v389
    %v391 = vpop.xlane.xlu0 %390
    %v392 = vsel %vm39, %v358, 0.0
    %393 = vadd.xlane.f32.xlu0 %v392
    %v394 = vpop.xlane.xlu0 %393
    %v395 = vsel %vm39, %v359, 0.0
    %396 = vadd.xlane.f32.xlu0 %v395
    %v397 = vpop.xlane.xlu0 %396
    %v398 = vsel %vm39, %v360, 0.0
    %399 = vadd.xlane.f32.xlu0 %v398
    %v400 = vpop.xlane.xlu0 %399
    %v401 = vsel %vm39, %v361, 0.0
    %402 = vadd.xlane.f32.xlu0 %v401
    %v403 = vpop.xlane.xlu0 %402
    %v404 = vsel %vm39, %v362, 0.0
    %405 = vadd.xlane.f32.xlu0 %v404
    %v406 = vpop.xlane.xlu0 %405
    %v407 = vsel %vm39, %v363, 0.0
    %408 = vadd.xlane.f32.xlu0 %v407
    %v409 = vpop.xlane.xlu0 %408
    %v410 = vsel %vm39, %v364, 0.0
    %411 = vadd.xlane.f32.xlu0 %v410
    %v412 = vpop.xlane.xlu0 %411
    %v413 = vadd.f32 %v367, %v234
    %v414 = vadd.f32 %v370, %v234
    %v415 = vadd.f32 %v373, %v234
    %v416 = vadd.f32 %v376, %v234
    %v417 = vadd.f32 %v379, %v234
    %v418 = vadd.f32 %v382, %v234
    %v419 = vadd.f32 %v385, %v234
    %v420 = vadd.f32 %v388, %v234
    %v421 = vadd.f32 %v391, %v234
    %v422 = vadd.f32 %v394, %v234
    %v423 = vadd.f32 %v397, %v234
    %v424 = vadd.f32 %v400, %v234
    %v425 = vadd.f32 %v403, %v234
    %v426 = vadd.f32 %v406, %v234
    %v427 = vadd.f32 %v409, %v234
    %v428 = vadd.f32 %v412, %v234
    %v445 = vperm.slane %v413, %v268
    %v446 = vperm.slane %v414, %v270
    %v447 = vsel %vm272, %v446, %v445
    %v448 = vperm.slane %v415, %v274
    %v449 = vsel %vm276, %v448, %v447
    %v450 = vperm.slane %v416, %v278
    %v451 = vsel %vm280, %v450, %v449
    %v452 = vperm.slane %v417, %v282
    %v453 = vsel %vm284, %v452, %v451
    %v454 = vperm.slane %v418, %v286
    %v455 = vsel %vm288, %v454, %v453
    %v456 = vperm.slane %v419, %v290
    %v457 = vsel %vm292, %v456, %v455
    %v458 = vperm.slane %v420, %v294
    %v459 = vsel %vm296, %v458, %v457
    %v460 = vperm.slane %v421, %v298
    %v461 = vsel %vm300, %v460, %v459
    %v462 = vperm.slane %v422, %v302
    %v463 = vsel %vm304, %v462, %v461
    %v464 = vperm.slane %v423, %v306
    %v465 = vsel %vm308, %v464, %v463
    %v466 = vperm.slane %v424, %v310
    %v467 = vsel %vm312, %v466, %v465
    %v468 = vperm.slane %v425, %v314
    %v469 = vsel %vm316, %v468, %v467
    %v470 = vperm.slane %v426, %v318
    %v471 = vsel %vm320, %v470, %v469
    %v472 = vperm.slane %v427, %v322
    %v473 = vsel %vm324, %v472, %v471
    %v474 = vperm.slane %v428, %v326
    %v475 = vsel %vm328, %v474, %v473
    %477 = vst [vmem:[#allocation3 + $0x1] sm:$0x1] %v475
    %s478 = scalar_lea.vmem %s2, 256
    %v479 = vld [vmem:[%s478] sm:$0xff]
    %v480 = vld [vmem:[%s478 + $0x8] sm:$0xff]
    %v481 = vld [vmem:[%s478 + $0x10] sm:$0xff]
    %v482 = vld [vmem:[%s478 + $0x18] sm:$0xff]
    %v483 = vld [vmem:[%s478 + $0x20] sm:$0xff]
    %v484 = vld [vmem:[%s478 + $0x28] sm:$0xff]
    %v485 = vld [vmem:[%s478 + $0x30] sm:$0xff]
    %v486 = vld [vmem:[%s478 + $0x38] sm:$0xff]
    %v487 = vld [vmem:[%s478 + $0x40] sm:$0xff]
    %v488 = vld [vmem:[%s478 + $0x48] sm:$0xff]
    %v489 = vld [vmem:[%s478 + $0x50] sm:$0xff]
    %v490 = vld [vmem:[%s478 + $0x58] sm:$0xff]
    %v491 = vld [vmem:[%s478 + $0x60] sm:$0xff]
    %v492 = vld [vmem:[%s478 + $0x68] sm:$0xff]
    %v493 = vld [vmem:[%s478 + $0x70] sm:$0xff]
    %v494 = vld [vmem:[%s478 + $0x78] sm:$0xff]
    %v495 = vmul.f32 %v106, %v479
    %v496 = vmul.f32 %v109, %v480
    %v497 = vmul.f32 %v112, %v481
    %v498 = vmul.f32 %v115, %v482
    %v499 = vmul.f32 %v118, %v483
    %v500 = vmul.f32 %v121, %v484
    %v501 = vmul.f32 %v124, %v485
    %v502 = vmul.f32 %v127, %v486
    %v503 = vmul.f32 %v130, %v487
    %v504 = vmul.f32 %v133, %v488
    %v505 = vmul.f32 %v136, %v489
    %v506 = vmul.f32 %v139, %v490
    %v507 = vmul.f32 %v142, %v491
    %v508 = vmul.f32 %v145, %v492
    %v509 = vmul.f32 %v148, %v493
    %v510 = vmul.f32 %v151, %v494
    %v511 = vsel %vm39, %v495, 0.0
    %512 = vadd.xlane.f32.xlu0 %v511
    %v513 = vpop.xlane.xlu0 %512
    %v514 = vsel %vm39, %v496, 0.0
    %515 = vadd.xlane.f32.xlu0 %v514
    %v516 = vpop.xlane.xlu0 %515
    %v517 = vsel %vm39, %v497, 0.0
    %518 = vadd.xlane.f32.xlu0 %v517
    %v519 = vpop.xlane.xlu0 %518
    %v520 = vsel %vm39, %v498, 0.0
    %521 = vadd.xlane.f32.xlu0 %v520
    %v522 = vpop.xlane.xlu0 %521
    %v523 = vsel %vm39, %v499, 0.0
    %524 = vadd.xlane.f32.xlu0 %v523
    %v525 = vpop.xlane.xlu0 %524
    %v526 = vsel %vm39, %v500, 0.0
    %527 = vadd.xlane.f32.xlu0 %v526
    %v528 = vpop.xlane.xlu0 %527
    %v529 = vsel %vm39, %v501, 0.0
    %530 = vadd.xlane.f32.xlu0 %v529
    %v531 = vpop.xlane.xlu0 %530
    %v532 = vsel %vm39, %v502, 0.0
    %533 = vadd.xlane.f32.xlu0 %v532
    %v534 = vpop.xlane.xlu0 %533
    %v535 = vsel %vm39, %v503, 0.0
    %536 = vadd.xlane.f32.xlu0 %v535
    %v537 = vpop.xlane.xlu0 %536
    %v538 = vsel %vm39, %v504, 0.0
    %539 = vadd.xlane.f32.xlu0 %v538
    %v540 = vpop.xlane.xlu0 %539
    %v541 = vsel %vm39, %v505, 0.0
    %542 = vadd.xlane.f32.xlu0 %v541
    %v543 = vpop.xlane.xlu0 %542
    %v544 = vsel %vm39, %v506, 0.0
    %545 = vadd.xlane.f32.xlu0 %v544
    %v546 = vpop.xlane.xlu0 %545
    %v547 = vsel %vm39, %v507, 0.0
    %548 = vadd.xlane.f32.xlu0 %v547
    %v549 = vpop.xlane.xlu0 %548
    %v550 = vsel %vm39, %v508, 0.0
    %551 = vadd.xlane.f32.xlu0 %v550
    %v552 = vpop.xlane.xlu0 %551
    %v553 = vsel %vm39, %v509, 0.0
    %554 = vadd.xlane.f32.xlu0 %v553
    %v555 = vpop.xlane.xlu0 %554
    %v556 = vsel %vm39, %v510, 0.0
    %557 = vadd.xlane.f32.xlu0 %v556
    %v558 = vpop.xlane.xlu0 %557
    %v559 = vadd.f32 %v513, %v234
    %v560 = vadd.f32 %v516, %v234
    %v561 = vadd.f32 %v519, %v234
    %v562 = vadd.f32 %v522, %v234
    %v563 = vadd.f32 %v525, %v234
    %v564 = vadd.f32 %v528, %v234
    %v565 = vadd.f32 %v531, %v234
    %v566 = vadd.f32 %v534, %v234
    %v567 = vadd.f32 %v537, %v234
    %v568 = vadd.f32 %v540, %v234
    %v569 = vadd.f32 %v543, %v234
    %v570 = vadd.f32 %v546, %v234
    %v571 = vadd.f32 %v549, %v234
    %v572 = vadd.f32 %v552, %v234
    %v573 = vadd.f32 %v555, %v234
    %v574 = vadd.f32 %v558, %v234
    %v591 = vperm.slane %v559, %v268
    %v592 = vperm.slane %v560, %v270
    %v593 = vsel %vm272, %v592, %v591
    %v594 = vperm.slane %v561, %v274
    %v595 = vsel %vm276, %v594, %v593
    %v596 = vperm.slane %v562, %v278
    %v597 = vsel %vm280, %v596, %v595
    %v598 = vperm.slane %v563, %v282
    %v599 = vsel %vm284, %v598, %v597
    %v600 = vperm.slane %v564, %v286
    %v601 = vsel %vm288, %v600, %v599
    %v602 = vperm.slane %v565, %v290
    %v603 = vsel %vm292, %v602, %v601
    %v604 = vperm.slane %v566, %v294
    %v605 = vsel %vm296, %v604, %v603
    %v606 = vperm.slane %v567, %v298
    %v607 = vsel %vm300, %v606, %v605
    %v608 = vperm.slane %v568, %v302
    %v609 = vsel %vm304, %v608, %v607
    %v610 = vperm.slane %v569, %v306
    %v611 = vsel %vm308, %v610, %v609
    %v612 = vperm.slane %v570, %v310
    %v613 = vsel %vm312, %v612, %v611
    %v614 = vperm.slane %v571, %v314
    %v615 = vsel %vm316, %v614, %v613
    %v616 = vperm.slane %v572, %v318
    %v617 = vsel %vm320, %v616, %v615
    %v618 = vperm.slane %v573, %v322
    %v619 = vsel %vm324, %v618, %v617
    %v620 = vperm.slane %v574, %v326
    %v621 = vsel %vm328, %v620, %v619
    %623 = vst [vmem:[#allocation3 + $0x2] sm:$0x1] %v621
    // Predicated region
    $region18: #{tpu_custom_call.1} parent=1 // pred_check
      _
    $region19: #{tpu_custom_call.1} parent=1 // pred_check_branch
      %625 = sbr.rel (0) target = $region21
    $region20: #{tpu_custom_call.1} parent=1 // pred_region
      %627 = vsyncadd [#allocation4], 0
      %s629 = sshll.u32 [#allocation3], 4
      %s630 = int_to_ptr.vmem [resolvable:$true] %s629
      %s631 = sshll.u32 %s4, 4
      %s632 = int_to_ptr.hbm [resolvable:$true] %s631
      %634 = dma.vmem_to_hbm [thread:$0]  %s630, 64, %s632, [#allocation4]
    $region21: #{tpu_custom_call.1} parent=1 // pred_fallthru
      _
    // Predicated region
    $region22: #{tpu_custom_call.1} parent=1 // pred_check
      _
    $region23: #{tpu_custom_call.1} parent=1 // pred_check_branch
      %636 = sbr.rel (0) target = $region25
    $region24: #{tpu_custom_call.1} parent=1 // pred_region
      %638 = dma.done [#allocation4], 64
    $region25: #{tpu_custom_call.1} parent=1 // pred_fallthru
      _
    %639 = vsyncpa [#allocation4], 1

</llo_original>
